<compile_context>
chip_gen: v6e
topology: v6e:2x2x1
jax: 0.10.0
libtpu: 0.0.40
codegen_flags: <defaults>
</compile_context>

<pallas_src>
import jax
import jax.numpy as jnp
from jax.experimental import pallas as pl
from jax.experimental.pallas import tpu as pltpu


# ----------------------------- kernels -------------------------------------


def _pe2d_bcast_kernel(x_ref, h_ref, w_ref, o_ref):
    # x_ref, o_ref : (TH, W, D)   -- D lane-dense (D % 128 == 0 on this path)
    # h_ref        : (TH, D)      -- row embedding tile
    # w_ref        : (W, D)       -- column embedding slab (resident)
    o_ref[...] = x_ref[...] + h_ref[...][:, None, :] + w_ref[...][None, :, :]


def _pe2d_add_kernel(x_ref, pe_ref, o_ref):
    # x_ref, pe_ref, o_ref : (TH, W*D) -- lane-dense flattened tiles
    o_ref[...] = x_ref[...] + pe_ref[...]


# ----------------------------- helpers --------------------------------------


def _vmem_budget_bytes():
    """Scoped-VMEM budget for this call, with headroom for compiler scratch."""
    try:
        cap = int(pltpu.get_tpu_info().vmem_capacity_bytes)
    except Exception:
        cap = 64 << 20  # v7x per-TensorCore VMEM; conservative fallback
    # Leave >=16 MiB headroom; never ask for more than 96 MiB.
    return max(32 << 20, min(cap - (16 << 20), 96 << 20))


def _choose_tile_h(B, H, row_bytes, itemsize, target_bytes):
    """Pick the H-tile: dtype-aware sublane granule, divides H, fits target.

    Falls back to the SMALLEST legal tile (never a huge full-H block) when no
    tile fits the per-block target.
    """
    granule = 8 * max(1, 4 // max(1, itemsize))  # 8 f32, 16 bf16, 32 int8/fp8
    legal = [th for th in range(granule, H + 1, granule) if H % th == 0]
    if not legal:
        return H  # full-extent block equals the array dim -> always legal
    fitting = [th for th in legal if th * row_bytes <= target_bytes]
    if not fitting:
        return legal[0]  # smallest legal tile instead of blowing scoped VMEM
    th = max(fitting)
    # Prefer >=2 total grid points so v7x's two TensorCores both get work;
    # on single-TC chips this costs at most one extra ~0.35us grid step.
    if B * (H // th) < 2:
        smaller = [c for c in fitting if H // c >= 2]
        if smaller:
            th = max(smaller)
    return th


# ----------------------------- wrapper ---------------------------------------


def learned_positional_encoding_2d(x, h_embed_table, w_embed_table, *, donate_x=False):
    """x: [B, H, W, D]; h_embed_table: [max_h, D]; w_embed_table: [max_w, D].

    Returns x + h_emb + w_emb (dropout = identity / eval mode).
    """
    B, H, W, D = x.shape
    assert H <= h_embed_table.shape[0], "H exceeds max_h of h_embed table"
    assert W <= w_embed_table.shape[0], "W exceeds max_w of w_embed table"

    itemsize = x.dtype.itemsize
    budget = _vmem_budget_bytes()
    target_block = budget // 6           # 3 arrays x 2 pipeline buffers worst case
    row_bytes = W * D * itemsize
    th = _choose_tile_h(B, H, row_bytes, itemsize, target_block)

    grid = (H // th, B)                  # h outer (parallel), batch innermost
    cparams = pltpu.CompilerParams(
        dimension_semantics=("parallel", "arbitrary"),
        vmem_limit_bytes=budget,
    )
    alias_kwargs = {"input_output_aliases": {0: 0}} if donate_x else {}

    if D % 128 == 0:
        # --- In-kernel broadcast path: no PE slab materialization at all. ---
        h_sl = h_embed_table[:H].astype(x.dtype)   # (H, D)  -- tiny
        w_sl = w_embed_table[:W].astype(x.dtype)   # (W, D)  -- tiny, resident
        return pl.pallas_call(
            _pe2d_bcast_kernel,
            out_shape=jax.ShapeDtypeStruct((B, H, W, D), x.dtype),
            grid=grid,
            in_specs=[
                # batch dim squeezed out of the kernel view
                pl.BlockSpec((None, th, W, D), lambda h, b: (b, h, 0, 0)),
                # index depends only on h -> fetched once per h-block
                pl.BlockSpec((th, D), lambda h, b: (h, 0)),
                # constant index -> fetched once for the whole call
                pl.BlockSpec((W, D), lambda h, b: (0, 0)),
            ],
            out_specs=pl.BlockSpec((None, th, W, D), lambda h, b: (b, h, 0, 0)),
            compiler_params=cparams,
            **alias_kwargs,
        )(x, h_sl, w_sl)

    # --- Lane-dense flattened path (D not a multiple of 128). ---------------
    # Precombine the PE slab (O(H*W*D), streamed only once thanks to the grid
    # order) so the kernel is a single unmasked full-lane add.
    WD = W * D
    pe2 = (h_embed_table[:H][:, None, :]
           + w_embed_table[:W][None, :, :]).astype(x.dtype).reshape(H, WD)
    x2 = x.reshape(B, H, WD)

    out2 = pl.pallas_call(
        _pe2d_add_kernel,
        out_shape=jax.ShapeDtypeStruct((B, H, WD), x.dtype),
        grid=grid,
        in_specs=[
            pl.BlockSpec((None, th, WD), lambda h, b: (b, h, 0)),
            # index depends only on h -> PE block re-used across batch steps
            pl.BlockSpec((th, WD), lambda h, b: (h, 0)),
        ],
        out_specs=pl.BlockSpec((None, th, WD), lambda h, b: (b, h, 0)),
        compiler_params=cparams,
        **alias_kwargs,
    )(x2, pe2)

    return out2.reshape(B, H, W, D)


# ----------------------------- self-test -------------------------------------


if __name__ == "__main__":
    key = jax.random.PRNGKey(0)
    kx, kh, kw, kx2 = jax.random.split(key, 4)

    max_h = max_w = 64  # stand-in for 2048 at toy scale

    # Primary shape: lane-aligned D (real d_model >= 128) -> broadcast path.
    B, H, W, D = 2, 16, 16, 128
    x = jax.random.normal(kx, (B, H, W, D), dtype=jnp.float32)
    h_tab = jax.random.normal(kh, (max_h, D), dtype=jnp.float32)  # nn.Embedding ~ N(0,1)
    w_tab = jax.random.normal(kw, (max_w, D), dtype=jnp.float32)

    out = jax.block_until_ready(learned_positional_encoding_2d(x, h_tab, w_tab))
    ref = x + h_tab[:H][None, :, None, :] + w_tab[:W][None, None, :, :]
    assert out.shape == (B, H, W, D)
    assert jnp.allclose(out, ref, atol=1e-5), "mismatch vs reference (bcast path)"

    # Secondary shape: small D (not lane-aligned) -> precombined flat path.
    D2 = 32
    x2 = jax.random.normal(kx2, (B, H, W, D2), dtype=jnp.float32)
    h_tab2 = h_tab[:, :D2]
    w_tab2 = w_tab[:, :D2]
    out2 = jax.block_until_ready(learned_positional_encoding_2d(x2, h_tab2, w_tab2))
    ref2 = x2 + h_tab2[:H][None, :, None, :] + w_tab2[:W][None, None, :, :]
    assert out2.shape == (B, H, W, D2)
    assert jnp.allclose(out2, ref2, atol=1e-5), "mismatch vs reference (flat path)"

    print("KERNEL_OK")
</pallas_src>

<mosaic_0001>
module attributes {stable_mosaic.version = 11 : i64} {
  func.func @_pe2d_bcast_kernel(%arg0: i32, %arg1: i32, %arg2: memref<1x16x16x128xf32, #tpu.memory_space<vmem>>, %arg3: memref<16x128xf32, #tpu.memory_space<vmem>>, %arg4: memref<16x128xf32, #tpu.memory_space<vmem>>, %arg5: memref<1x16x16x128xf32, #tpu.memory_space<vmem>>) attributes {dimension_semantics = [#tpu.dimension_semantics<parallel>, #tpu.dimension_semantics<arbitrary>], iteration_bounds = array<i64: 1, 2>, scalar_prefetch = 0 : i64, scratch_operands = 0 : i64, tpu.core_type = #tpu.core_type<tc>, window_params = [{transform_indices = @transform_0, window_bounds = array<i64: 1, 16, 16, 128>}, {transform_indices = @transform_1, window_bounds = array<i64: 16, 128>}, {pipeline_mode = #tpu.pipeline_mode<synchronous>, transform_indices = @transform_2, window_bounds = array<i64: 16, 128>}, {transform_indices = @transform_3, window_bounds = array<i64: 1, 16, 16, 128>}]} {
    %c0 = arith.constant 0 : index
    %c0_0 = arith.constant 0 : index
    %c0_1 = arith.constant 0 : index
    %c0_2 = arith.constant 0 : index
    %0 = vector.load %arg2[%c0, %c0_0, %c0_1, %c0_2] : memref<1x16x16x128xf32, #tpu.memory_space<vmem>>, vector<1x16x16x128xf32>
    %1 = vector.shape_cast %0 : vector<1x16x16x128xf32> to vector<16x16x128xf32>
    %c0_3 = arith.constant 0 : index
    %c0_4 = arith.constant 0 : index
    %2 = vector.load %arg3[%c0_3, %c0_4] : memref<16x128xf32, #tpu.memory_space<vmem>>, vector<16x128xf32>
    %3 = vector.shape_cast %2 : vector<16x128xf32> to vector<16x1x128xf32>
    %4 = vector.broadcast %3 : vector<16x1x128xf32> to vector<16x16x128xf32>
    %5 = arith.addf %1, %4 : vector<16x16x128xf32>
    %c0_5 = arith.constant 0 : index
    %c0_6 = arith.constant 0 : index
    %6 = vector.load %arg4[%c0_5, %c0_6] : memref<16x128xf32, #tpu.memory_space<vmem>>, vector<16x128xf32>
    %7 = vector.shape_cast %6 : vector<16x128xf32> to vector<1x16x128xf32>
    %8 = vector.broadcast %7 : vector<1x16x128xf32> to vector<16x16x128xf32>
    %9 = arith.addf %5, %8 : vector<16x16x128xf32>
    %c0_7 = arith.constant 0 : index
    %c0_8 = arith.constant 0 : index
    %c0_9 = arith.constant 0 : index
    %c0_10 = arith.constant 0 : index
    %10 = vector.load %arg5[%c0_7, %c0_8, %c0_9, %c0_10] : memref<1x16x16x128xf32, #tpu.memory_space<vmem>>, vector<1x16x16x128xf32>
    %11 = vector.shape_cast %10 : vector<1x16x16x128xf32> to vector<16x16x128xf32>
    %12 = vector.shape_cast %9 : vector<16x16x128xf32> to vector<1x16x16x128xf32>
    tpu.vector_store %arg5[%c0_7, %c0_8, %c0_9, %c0_10], %12 {strides = array<i32>} : memref<1x16x16x128xf32, #tpu.memory_space<vmem>>, vector<1x16x16x128xf32>,
    return
  }
  func.func @transform_0(%arg0: i32, %arg1: i32) -> (i32, i32, i32, i32) {
    %c0_i32 = arith.constant 0 : i32
    %c0_i32_0 = arith.constant 0 : i32
    %c0_i32_1 = arith.constant 0 : i32
    return %arg1, %arg0, %c0_i32, %c0_i32_0 : i32, i32, i32, i32
  }
  func.func @transform_1(%arg0: i32, %arg1: i32) -> (i32, i32) {
    %c0_i32 = arith.constant 0 : i32
    %c0_i32_0 = arith.constant 0 : i32
    return %arg0, %c0_i32 : i32, i32
  }
  func.func @transform_2(%arg0: i32, %arg1: i32) -> (i32, i32) {
    %c0_i32 = arith.constant 0 : i32
    %c0_i32_0 = arith.constant 0 : i32
    %c0_i32_1 = arith.constant 0 : i32
    return %c0_i32, %c0_i32_0 : i32, i32
  }
  func.func @transform_3(%arg0: i32, %arg1: i32) -> (i32, i32, i32, i32) {
    %c0_i32 = arith.constant 0 : i32
    %c0_i32_0 = arith.constant 0 : i32
    %c0_i32_1 = arith.constant 0 : i32
    return %arg1, %arg0, %c0_i32, %c0_i32_0 : i32, i32, i32, i32
  }
}

</mosaic_0001>

<llo_original>
// kernel: tpu_custom_call.1
$region0: #{tpu_custom_call.1}
  #allocation0 [shape = 'u32[]', space=smem, size = 0x4, offset = 0x4, fixed_abs, tag = 'smem constant byte address 0x4 - core index']
  #allocation1 [shape = 'u32[144,128]{1,0:T(1,128)}', space=vmem, size = 0x12000, scoped, tag = 'internal scratch']
  %s0 = inlined_call_operand.hbm [shape: f32[2,16,16,128], index: 0, kind: input, shape index: {}]
  %s1 = inlined_call_operand.hbm [shape: f32[16,128], index: 1, kind: input, shape index: {}]
  %s2 = inlined_call_operand.hbm [shape: f32[16,128], index: 2, kind: input, shape index: {}]
  %s3 = inlined_call_operand.hbm [shape: f32[2,16,16,128], index: 3, kind: output, shape index: {}]
  %s4 = sld [smem:[#allocation0]]
  $region57: #{tpu_custom_call.1} parent=0
    _
  %s6 = ssub.s32 1, %s4
  %s7 = scalar_select 0, %s6, %s4
  $region1: #{tpu_custom_call.1} parent=0
    #allocation2 [shape = 'u8[262144]{0}', space=vmem, size = 0x40000, scoped, tag = 'input window, operand 0']
    #allocation3 [shape = 's32[2]{0}', space=sflag, size = 0x8, scoped, tag = 'scoped memory for tpu_custom_call.1']
    #allocation4 [shape = 's32[2]{0}', space=sflag, size = 0x8, scoped, tag = 'scoped memory for tpu_custom_call.1']
    #allocation5 [shape = 'u8[8192]{0}', space=vmem, size = 0x2000, scoped, tag = 'input window, operand 1, single buffered']
    #allocation6 [shape = 's32[1]{0}', space=sflag, size = 0x4, scoped, tag = 'scoped memory for tpu_custom_call.1']
    #allocation7 [shape = 'u8[8192]{0}', space=vmem, size = 0x2000, scoped, tag = 'input window, operand 2, single buffered']
    #allocation8 [shape = 'u8[262144]{0}', space=vmem, size = 0x40000, scoped, tag = 'output window, operand 0']
    %8 = vsyncpa [#allocation3], 0
    %s9 = scalar_lea.sflag [#allocation3], 1
    %10 = vsyncpa %s9, 0
    %11 = vsyncpa [#allocation6], 0
    %12 = vsyncpa [#allocation4], 0
    %s13 = scalar_lea.sflag [#allocation4], 1
    %14 = vsyncpa %s13, 0
    loop: start=0, step=1, limit=4
    $region2: #{tpu_custom_call.1} parent=1 // loop_pre_header
      _
    $region3: #{tpu_custom_call.1} parent=1 // loop_header
      %s16 = sphi 0, %s20
      %p17 = scmp.ge.s32.totalorder %s16, 4
      %s23 = sphi 0, %s35
      %s24 = sphi 0, %s31
      %s25 = sphi 0, %s23
      %s26 = sphi 0, %s24
      %s27 = sphi 0, %s25
      %s28 = sphi 0, %s26
      %s40 = sphi 0, %s42
      %s43 = sphi 0, %s40
      %s44 = sphi 0, %s43
      %s60 = sphi 0, %s44
      %s66 = sphi 0, %s68
      %s69 = sphi 0, %s66
      %s70 = sphi 0, %s69
      %s86 = sphi 0, %s70
      %s90 = sphi 0, %s90
      %s92 = sphi 0, %s90
      %s93 = sphi 0, %s92
      %s107 = sphi 0, %s93
      %s115 = sphi 0, %s117
      %s118 = sphi 0, %s115
      %s119 = sphi 0, %s118
      %s135 = sphi 0, %s119
    $region4: #{tpu_custom_call.1} parent=1 // loop_header_branch
      %19 = sbr.rel (%p17) target = $region8
    $region5: #{tpu_custom_call.1} parent=1 // loop_body
      %s21 = ssub.s32 %s16, 1
      %s22 = ssub.s32 %s16, 2
      %s29 = sadd.s32 1, %s24
      %p30 = scmp.ge.s32.totalorder %s29, 2
      %s31 = scalar_select %p30, 0, %s29
      %s32 = sadd.s32 1, %s23
      %s33 = scalar_select %p30, %s32, %s23
      %p34 = scmp.ge.s32.totalorder %s33, 1
      %s35 = scalar_select %p34, 0, %s33
      %s36 = ssub.s32 %s24, %s31
      %s37 = ssub.s32 %s23, %s35
      %s38 = sor.u32 %s36, %s37
      %p39 = scmp.eq.s32.totalorder %s38, 0
      %s41 = sadd.s32 %s40, 1
      %s42 = scalar_select %p39, %s40, %s41
      %p45 = pneg %p39
      %p46 = scmp.eq.s32.totalorder %s16, 1
      %p47 = por %p45, %p46
      %p48 = scmp.ne.s32.totalorder %s40, %s43
      %p49 = scmp.eq.s32.totalorder %s16, 0
      %p50 = por %p48, %p49
      %p51 = scmp.ne.s32.totalorder %s40, %s43
      %p52 = scmp.eq.s32.totalorder %s21, 1
      %p53 = por %p51, %p52
      %p54 = scmp.ne.s32.totalorder %s43, %s44
      %p55 = scmp.eq.s32.totalorder %s21, 0
      %p56 = por %p54, %p55
      %p57 = scmp.ne.s32.totalorder %s43, %s44
      %p58 = scmp.eq.s32.totalorder %s22, 1
      %p59 = por %p57, %p58
      %p61 = scmp.ne.s32.totalorder %s44, %s60
      %p62 = scmp.eq.s32.totalorder %s22, 0
      %p63 = por %p61, %p62
      %s64 = ssub.s32 %s23, %s35
      %p65 = scmp.eq.s32.totalorder %s64, 0
      %s67 = sadd.s32 %s66, 1
      %s68 = scalar_select %p65, %s66, %s67
      %p71 = pneg %p65
      %p72 = scmp.eq.s32.totalorder %s16, 1
      %p73 = por %p71, %p72
      %p74 = scmp.ne.s32.totalorder %s66, %s69
      %p75 = scmp.eq.s32.totalorder %s16, 0
      %p76 = por %p74, %p75
      %p77 = scmp.ne.s32.totalorder %s66, %s69
      %p78 = scmp.eq.s32.totalorder %s21, 1
      %p79 = por %p77, %p78
      %p80 = scmp.ne.s32.totalorder %s69, %s70
      %p81 = scmp.eq.s32.totalorder %s21, 0
      %p82 = por %p80, %p81
      %p83 = scmp.ne.s32.totalorder %s69, %s70
      %p84 = scmp.eq.s32.totalorder %s22, 1
      %p85 = por %p83, %p84
      %p87 = scmp.ne.s32.totalorder %s70, %s86
      %p88 = scmp.eq.s32.totalorder %s22, 0
      %p89 = por %p87, %p88
      %s91 = sadd.s32 %s90, 1
      %p94 = scmp.eq.s32.totalorder %s16, 1
      %p95 = scmp.ne.s32.totalorder %s90, %s92
      %p96 = scmp.eq.s32.totalorder %s16, 0
      %p97 = por %p95, %p96
      %p98 = scmp.ne.s32.totalorder %s90, %s92
      %p99 = scmp.eq.s32.totalorder %s21, 1
      %p100 = por %p98, %p99
      %p101 = scmp.ne.s32.totalorder %s92, %s93
      %p102 = scmp.eq.s32.totalorder %s21, 0
      %p103 = por %p101, %p102
      %p104 = scmp.ne.s32.totalorder %s92, %s93
      %p105 = scmp.eq.s32.totalorder %s22, 1
      %p106 = por %p104, %p105
      %p108 = scmp.ne.s32.totalorder %s93, %s107
      %p109 = scmp.eq.s32.totalorder %s22, 0
      %p110 = por %p108, %p109
      %s111 = ssub.s32 %s24, %s31
      %s112 = ssub.s32 %s23, %s35
      %s113 = sor.u32 %s111, %s112
      %p114 = scmp.eq.s32.totalorder %s113, 0
      %s116 = sadd.s32 %s115, 1
      %s117 = scalar_select %p114, %s115, %s116
      %p120 = pneg %p114
      %p121 = scmp.eq.s32.totalorder %s16, 1
      %p122 = por %p120, %p121
      %p123 = scmp.ne.s32.totalorder %s115, %s118
      %p124 = scmp.eq.s32.totalorder %s16, 0
      %p125 = por %p123, %p124
      %p126 = scmp.ne.s32.totalorder %s115, %s118
      %p127 = scmp.eq.s32.totalorder %s21, 1
      %p128 = por %p126, %p127
      %p129 = scmp.ne.s32.totalorder %s118, %s119
      %p130 = scmp.eq.s32.totalorder %s21, 0
      %p131 = por %p129, %p130
      %p132 = scmp.ne.s32.totalorder %s118, %s119
      %p133 = scmp.eq.s32.totalorder %s22, 1
      %p134 = por %p132, %p133
      %p136 = scmp.ne.s32.totalorder %s119, %s135
      %p137 = scmp.eq.s32.totalorder %s22, 0
      %p138 = por %p136, %p137
      %p139 = scmp.le.s32.totalorder 1, %s16
      %p140 = scmp.lt.s32.totalorder %s16, 3
      %p141 = pnand %p139, %p140
      %p142 = pneg %p141
      // Predicated region
      $region9: #{tpu_custom_call.1} parent=5 // pred_check
        _
      $region10: #{tpu_custom_call.1} parent=5 // pred_check_branch
        %144 = sbr.rel (%p141) target = $region12
      $region11: #{tpu_custom_call.1} parent=5 // pred_region
        %s145 = ssub.s32 %s16, 1
        // Predicated region
        $region13: #{tpu_custom_call.1} parent=11 // pred_check
          %p146 = pneg %p82
        $region14: #{tpu_custom_call.1} parent=11 // pred_check_branch
          %148 = sbr.rel (%p146) target = $region16
        $region15: #{tpu_custom_call.1} parent=11 // pred_region
          %s149 = smul.u32 2, %s25
          %s151 = ssub.s32 256, 256
          %152 = vsyncadd [#allocation6], %s151
          %s153 = smul.addr %s149, 128
          %s154 = scalar_lea.hbm %s1, %s153
          %s155 = sshll.u32 [#allocation5], 4
          %s156 = int_to_ptr.vmem [resolvable:$true] %s155
          %161 = dma.hbm_to_vmem [thread:$0]  %s154, 256, %s156, [#allocation6], 128, 128, 8
        $region16: #{tpu_custom_call.1} parent=11 // pred_fallthru
          _
        // Predicated region
        $region17: #{tpu_custom_call.1} parent=11 // pred_check
          %p162 = pneg %p103
        $region18: #{tpu_custom_call.1} parent=11 // pred_check_branch
          %164 = sbr.rel (%p162) target = $region20
        $region19: #{tpu_custom_call.1} parent=11 // pred_region
          %s166 = ssub.s32 256, 256
          %167 = vsyncadd [#allocation6], %s166
          %s168 = sshll.u32 [#allocation7], 4
          %s169 = int_to_ptr.vmem [resolvable:$true] %s168
          %174 = dma.hbm_to_vmem [thread:$0]  %s2, 256, %s169, [#allocation6], 128, 128, 8
        $region20: #{tpu_custom_call.1} parent=11 // pred_fallthru
          _
      $region12: #{tpu_custom_call.1} parent=5 // pred_fallthru
        _
      %p175 = scmp.lt.s32.totalorder %s16, 2
      // Predicated region
      $region21: #{tpu_custom_call.1} parent=5 // pred_check
        %p176 = pneg %p175
      $region22: #{tpu_custom_call.1} parent=5 // pred_check_branch
        %178 = sbr.rel (%p176) target = $region24
      $region23: #{tpu_custom_call.1} parent=5 // pred_region
        // Predicated region
        $region25: #{tpu_custom_call.1} parent=23 // pred_check
          %p179 = pneg %p50
        $region26: #{tpu_custom_call.1} parent=23 // pred_check_branch
          %181 = sbr.rel (%p179) target = $region28
        $region27: #{tpu_custom_call.1} parent=23 // pred_region
          %s182 = sand.u32 %s40, 1
          %s183 = scalar_lea.sflag [#allocation3], %s182
          %s184 = sand.u32 %s40, 1
          %s185 = smul.addr %s184, 256
          %s186 = scalar_lea.vmem [#allocation2], %s185
          %s187 = smul.u32 16, %s23
          %s189 = ssub.s32 4096, 4096
          %190 = vsyncadd %s183, %s189
          %s191 = smul.addr %s187, 2
          %s192 = smul.addr %s24, 32
          %s193 = sadd.s32 %s191, %s192
          %s194 = smul.addr %s193, 128
          %s195 = scalar_lea.hbm %s0, %s194
          %s196 = sshll.u32 %s186, 4
          %s197 = int_to_ptr.vmem [resolvable:$true] %s196
          %202 = dma.hbm_to_vmem [thread:$0]  %s195, 4096, %s197, %s183, 128, 128, 8
        $region28: #{tpu_custom_call.1} parent=23 // pred_fallthru
          _
      $region24: #{tpu_custom_call.1} parent=5 // pred_fallthru
        _
      %p203 = scmp.le.s32.totalorder 1, %s16
      %p204 = scmp.lt.s32.totalorder %s16, 3
      %p205 = pnand %p203, %p204
      %p206 = pneg %p205
      // Predicated region
      $region29: #{tpu_custom_call.1} parent=5 // pred_check
        _
      $region30: #{tpu_custom_call.1} parent=5 // pred_check_branch
        %208 = sbr.rel (%p205) target = $region32
      $region31: #{tpu_custom_call.1} parent=5 // pred_region
        %s209 = ssub.s32 %s16, 1
        %s210 = sand.u32 %s43, 1
        %s211 = scalar_lea.sflag [#allocation3], %s210
        %s212 = sand.u32 %s43, 1
        %s213 = smul.addr %s212, 256
        %s214 = scalar_lea.vmem [#allocation2], %s213
        // Predicated region
        $region33: #{tpu_custom_call.1} parent=31 // pred_check
          %p215 = pneg %p56
        $region34: #{tpu_custom_call.1} parent=31 // pred_check_branch
          %217 = sbr.rel (%p215) target = $region36
        $region35: #{tpu_custom_call.1} parent=31 // pred_region
          %218 = dma.done %s211, 4096
        $region36: #{tpu_custom_call.1} parent=31 // pred_fallthru
          _
        // Predicated region
        $region37: #{tpu_custom_call.1} parent=31 // pred_check
          %p219 = pneg %p82
        $region38: #{tpu_custom_call.1} parent=31 // pred_check_branch
          %221 = sbr.rel (%p219) target = $region40
        $region39: #{tpu_custom_call.1} parent=31 // pred_region
          %222 = dma.done [#allocation6], 256
        $region40: #{tpu_custom_call.1} parent=31 // pred_fallthru
          _
        // Predicated region
        $region41: #{tpu_custom_call.1} parent=31 // pred_check
          %p223 = pneg %p103
        $region42: #{tpu_custom_call.1} parent=31 // pred_check_branch
          %225 = sbr.rel (%p223) target = $region44
        $region43: #{tpu_custom_call.1} parent=31 // pred_region
          %226 = dma.done [#allocation6], 256
        $region44: #{tpu_custom_call.1} parent=31 // pred_fallthru
          _
        %s227 = sand.u32 %s43, 1
        %s228 = scalar_lea.sflag [#allocation3], %s227
        %s229 = sand.u32 %s43, 1
        %s230 = smul.addr %s229, 256
        %s231 = scalar_lea.vmem [#allocation2], %s230
        %p232 = pneg %p56
        %p233 = pneg %p53
        %p234 = pneg %p82
        %p235 = pneg %p79
        %p236 = pneg %p103
        %p237 = pneg %p100
        %p238 = pneg %p131
        %p239 = pneg %p128
        %s240 = sand.u32 %s118, 1
        %s241 = scalar_lea.sflag [#allocation4], %s240
        %s242 = sand.u32 %s118, 1
        %s243 = smul.addr %s242, 256
        %s244 = scalar_lea.vmem [#allocation8], %s243
        %s245 = smul.u32 16, %s25
        %s246 = smul.u32 2, %s25
        %s247 = smul.u32 16, %s25
        %v248 = vld [vmem:[%s214] sm:$0xff]
        %v249 = vld [vmem:[%s214 + $0x8] sm:$0xff]
        %v250 = vld [vmem:[%s214 + $0x10] sm:$0xff]
        %v251 = vld [vmem:[%s214 + $0x18] sm:$0xff]
        %v252 = vld [vmem:[%s214 + $0x20] sm:$0xff]
        %v253 = vld [vmem:[%s214 + $0x28] sm:$0xff]
        %v254 = vld [vmem:[%s214 + $0x30] sm:$0xff]
        %v255 = vld [vmem:[%s214 + $0x38] sm:$0xff]
        %v256 = vld [vmem:[%s214 + $0x40] sm:$0xff]
        %v257 = vld [vmem:[%s214 + $0x48] sm:$0xff]
        %v258 = vld [vmem:[%s214 + $0x50] sm:$0xff]
        %v259 = vld [vmem:[%s214 + $0x58] sm:$0xff]
        %v260 = vld [vmem:[%s214 + $0x60] sm:$0xff]
        %v261 = vld [vmem:[%s214 + $0x68] sm:$0xff]
        %v262 = vld [vmem:[%s214 + $0x70] sm:$0xff]
        %v263 = vld [vmem:[%s214 + $0x78] sm:$0xff]
        %v264 = vld [vmem:[%s214 + $0x80] sm:$0xff]
        %v265 = vld [vmem:[%s214 + $0x88] sm:$0xff]
        %v266 = vld [vmem:[%s214 + $0x90] sm:$0xff]
        %v267 = vld [vmem:[%s214 + $0x98] sm:$0xff]
        %v268 = vld [vmem:[%s214 + $0xa0] sm:$0xff]
        %v269 = vld [vmem:[%s214 + $0xa8] sm:$0xff]
        %v270 = vld [vmem:[%s214 + $0xb0] sm:$0xff]
        %v271 = vld [vmem:[%s214 + $0xb8] sm:$0xff]
        %v272 = vld [vmem:[%s214 + $0xc0] sm:$0xff]
        %v273 = vld [vmem:[%s214 + $0xc8] sm:$0xff]
        %v274 = vld [vmem:[%s214 + $0xd0] sm:$0xff]
        %v275 = vld [vmem:[%s214 + $0xd8] sm:$0xff]
        %v276 = vld [vmem:[%s214 + $0xe0] sm:$0xff]
        %v277 = vld [vmem:[%s214 + $0xe8] sm:$0xff]
        %v278 = vld [vmem:[%s214 + $0xf0] sm:$0xff]
        %v279 = vld [vmem:[%s214 + $0xf8] sm:$0xff]
        %v280 = vld [vmem:[#allocation5] sm:$0xff]
        %v281 = vld [vmem:[#allocation5 + $0x8] sm:$0xff]
        %v284 = vcombine.high %v280, %v280
        %v286 = vunpack.c.l.s4 1966171168
        %v287 = vunpack.c.0.s8 %v286
        %v288 = vlaneseq
        %v289 = vshrl.u32 %v288, 7
        %v290 = vsub.s32 %v287, %v289
        %v291 = vrot.slane %v280, %v290
        %v293 = vunpack.c.l.s4 1966171168
        %v294 = vunpack.c.0.s8 %v293
        %v295 = vlaneseq
        %v296 = vshrl.u32 %v295, 7
        %v297 = vsub.s32 %v294, %v296
        %v298 = vrot.slane %v284, %v297
        %v299 = vcombine.high %v291, %v291
        %v300 = vcombine.high %v298, %v298
        %v302 = vunpack.c.l.s4 1966171168
        %v303 = vunpack.c.0.s8 %v302
        %v304 = vlaneseq
        %v305 = vshrl.u32 %v304, 7
        %v306 = vsub.s32 %v303, %v305
        %v307 = vrot.slane %v291, %v306
        %v309 = vunpack.c.l.s4 1966171168
        %v310 = vunpack.c.0.s8 %v309
        %v311 = vlaneseq
        %v312 = vshrl.u32 %v311, 7
        %v313 = vsub.s32 %v310, %v312
        %v314 = vrot.slane %v298, %v313
        %v316 = vunpack.c.l.s4 1966171168
        %v317 = vunpack.c.0.s8 %v316
        %v318 = vlaneseq
        %v319 = vshrl.u32 %v318, 7
        %v320 = vsub.s32 %v317, %v319
        %v321 = vrot.slane %v299, %v320
        %v323 = vunpack.c.l.s4 1966171168
        %v324 = vunpack.c.0.s8 %v323
        %v325 = vlaneseq
        %v326 = vshrl.u32 %v325, 7
        %v327 = vsub.s32 %v324, %v326
        %v328 = vrot.slane %v300, %v327
        %v329 = vcombine.high %v307, %v307
        %v330 = vcombine.high %v314, %v314
        %v331 = vcombine.high %v321, %v321
        %v332 = vcombine.high %v328, %v328
        %v333 = vcombine.high %v281, %v281
        %v335 = vunpack.c.l.s4 1966171168
        %v336 = vunpack.c.0.s8 %v335
        %v337 = vlaneseq
        %v338 = vshrl.u32 %v337, 7
        %v339 = vsub.s32 %v336, %v338
        %v340 = vrot.slane %v281, %v339
        %v342 = vunpack.c.l.s4 1966171168
        %v343 = vunpack.c.0.s8 %v342
        %v344 = vlaneseq
        %v345 = vshrl.u32 %v344, 7
        %v346 = vsub.s32 %v343, %v345
        %v347 = vrot.slane %v333, %v346
        %v348 = vcombine.high %v340, %v340
        %v349 = vcombine.high %v347, %v347
        %v351 = vunpack.c.l.s4 1966171168
        %v352 = vunpack.c.0.s8 %v351
        %v353 = vlaneseq
        %v354 = vshrl.u32 %v353, 7
        %v355 = vsub.s32 %v352, %v354
        %v356 = vrot.slane %v340, %v355
        %v358 = vunpack.c.l.s4 1966171168
        %v359 = vunpack.c.0.s8 %v358
        %v360 = vlaneseq
        %v361 = vshrl.u32 %v360, 7
        %v362 = vsub.s32 %v359, %v361
        %v363 = vrot.slane %v347, %v362
        %v365 = vunpack.c.l.s4 1966171168
        %v366 = vunpack.c.0.s8 %v365
        %v367 = vlaneseq
        %v368 = vshrl.u32 %v367, 7
        %v369 = vsub.s32 %v366, %v368
        %v370 = vrot.slane %v348, %v369
        %v372 = vunpack.c.l.s4 1966171168
        %v373 = vunpack.c.0.s8 %v372
        %v374 = vlaneseq
        %v375 = vshrl.u32 %v374, 7
        %v376 = vsub.s32 %v373, %v375
        %v377 = vrot.slane %v349, %v376
        %v378 = vcombine.high %v356, %v356
        %v379 = vcombine.high %v363, %v363
        %v380 = vcombine.high %v370, %v370
        %v381 = vcombine.high %v377, %v377
        %v382 = vlaneseq
        %v383 = vshrl.u32 %v382, 7
        %v384 = vsub.s32 0, %v383
        %v385 = vrot.slane %v307, %v384
        %v386 = vlaneseq
        %v387 = vshrl.u32 %v386, 7
        %v388 = vsub.s32 0, %v387
        %v389 = vrot.slane %v321, %v388
        %v390 = vlaneseq
        %v391 = vshrl.u32 %v390, 7
        %v392 = vsub.s32 0, %v391
        %v393 = vrot.slane %v329, %v392
        %v394 = vlaneseq
        %v395 = vshrl.u32 %v394, 7
        %v396 = vsub.s32 0, %v395
        %v397 = vrot.slane %v331, %v396
        %v398 = vlaneseq
        %v399 = vshrl.u32 %v398, 7
        %v400 = vsub.s32 0, %v399
        %v401 = vrot.slane %v314, %v400
        %v402 = vlaneseq
        %v403 = vshrl.u32 %v402, 7
        %v404 = vsub.s32 0, %v403
        %v405 = vrot.slane %v328, %v404
        %v406 = vlaneseq
        %v407 = vshrl.u32 %v406, 7
        %v408 = vsub.s32 0, %v407
        %v409 = vrot.slane %v330, %v408
        %v410 = vlaneseq
        %v411 = vshrl.u32 %v410, 7
        %v412 = vsub.s32 0, %v411
        %v413 = vrot.slane %v332, %v412
        %v414 = vlaneseq
        %v415 = vshrl.u32 %v414, 7
        %v416 = vsub.s32 0, %v415
        %v417 = vrot.slane %v356, %v416
        %v418 = vlaneseq
        %v419 = vshrl.u32 %v418, 7
        %v420 = vsub.s32 0, %v419
        %v421 = vrot.slane %v370, %v420
        %v422 = vlaneseq
        %v423 = vshrl.u32 %v422, 7
        %v424 = vsub.s32 0, %v423
        %v425 = vrot.slane %v378, %v424
        %v426 = vlaneseq
        %v427 = vshrl.u32 %v426, 7
        %v428 = vsub.s32 0, %v427
        %v429 = vrot.slane %v380, %v428
        %v430 = vlaneseq
        %v431 = vshrl.u32 %v430, 7
        %v432 = vsub.s32 0, %v431
        %v433 = vrot.slane %v363, %v432
        %v434 = vlaneseq
        %v435 = vshrl.u32 %v434, 7
        %v436 = vsub.s32 0, %v435
        %v437 = vrot.slane %v377, %v436
        %v438 = vlaneseq
        %v439 = vshrl.u32 %v438, 7
        %v440 = vsub.s32 0, %v439
        %v441 = vrot.slane %v379, %v440
        %v442 = vlaneseq
        %v443 = vshrl.u32 %v442, 7
        %v444 = vsub.s32 0, %v443
        %v445 = vrot.slane %v381, %v444
        %v462 = vadd.f32 %v248, %v385
        %v463 = vadd.f32 %v249, %v385
        %v464 = vadd.f32 %v250, %v389
        %v465 = vadd.f32 %v251, %v389
        %v466 = vadd.f32 %v252, %v393
        %v467 = vadd.f32 %v253, %v393
        %v468 = vadd.f32 %v254, %v397
        %v469 = vadd.f32 %v255, %v397
        %v470 = vadd.f32 %v256, %v401
        %v471 = vadd.f32 %v257, %v401
        %v472 = vadd.f32 %v258, %v405
        %v473 = vadd.f32 %v259, %v405
        %v474 = vadd.f32 %v260, %v409
        %v475 = vadd.f32 %v261, %v409
        %v476 = vadd.f32 %v262, %v413
        %v477 = vadd.f32 %v263, %v413
        %v478 = vadd.f32 %v264, %v417
        %v479 = vadd.f32 %v265, %v417
        %v480 = vadd.f32 %v266, %v421
        %v481 = vadd.f32 %v267, %v421
        %v482 = vadd.f32 %v268, %v425
        %v483 = vadd.f32 %v269, %v425
        %v484 = vadd.f32 %v270, %v429
        %v485 = vadd.f32 %v271, %v429
        %v486 = vadd.f32 %v272, %v433
        %v487 = vadd.f32 %v273, %v433
        %v488 = vadd.f32 %v274, %v437
        %v489 = vadd.f32 %v275, %v437
        %v490 = vadd.f32 %v276, %v441
        %v491 = vadd.f32 %v277, %v441
        %v492 = vadd.f32 %v278, %v445
        %v493 = vadd.f32 %v279, %v445
        %v494 = vld [vmem:[#allocation7] sm:$0xff]
        %v495 = vld [vmem:[#allocation7 + $0x8] sm:$0xff]
        %v496 = vadd.f32 %v462, %v494
        %v497 = vadd.f32 %v463, %v495
        %v498 = vadd.f32 %v464, %v494
        %v499 = vadd.f32 %v465, %v495
        %v500 = vadd.f32 %v466, %v494
        %v501 = vadd.f32 %v467, %v495
        %v502 = vadd.f32 %v468, %v494
        %v503 = vadd.f32 %v469, %v495
        %v504 = vadd.f32 %v470, %v494
        %v505 = vadd.f32 %v471, %v495
        %v506 = vadd.f32 %v472, %v494
        %v507 = vadd.f32 %v473, %v495
        %v508 = vadd.f32 %v474, %v494
        %v509 = vadd.f32 %v475, %v495
        %v510 = vadd.f32 %v476, %v494
        %v511 = vadd.f32 %v477, %v495
        %v512 = vadd.f32 %v478, %v494
        %v513 = vadd.f32 %v479, %v495
        %v514 = vadd.f32 %v480, %v494
        %v515 = vadd.f32 %v481, %v495
        %v516 = vadd.f32 %v482, %v494
        %v517 = vadd.f32 %v483, %v495
        %v518 = vadd.f32 %v484, %v494
        %v519 = vadd.f32 %v485, %v495
        %v520 = vadd.f32 %v486, %v494
        %v521 = vadd.f32 %v487, %v495
        %v522 = vadd.f32 %v488, %v494
        %v523 = vadd.f32 %v489, %v495
        %v524 = vadd.f32 %v490, %v494
        %v525 = vadd.f32 %v491, %v495
        %v526 = vadd.f32 %v492, %v494
        %v527 = vadd.f32 %v493, %v495
        %528 = vst [vmem:[%s244] sm:$0xff] %v496
        %529 = vst [vmem:[%s244 + $0x8] sm:$0xff] %v497
        %530 = vst [vmem:[%s244 + $0x10] sm:$0xff] %v498
        %531 = vst [vmem:[%s244 + $0x18] sm:$0xff] %v499
        %532 = vst [vmem:[%s244 + $0x20] sm:$0xff] %v500
        %533 = vst [vmem:[%s244 + $0x28] sm:$0xff] %v501
        %534 = vst [vmem:[%s244 + $0x30] sm:$0xff] %v502
        %535 = vst [vmem:[%s244 + $0x38] sm:$0xff] %v503
        %536 = vst [vmem:[%s244 + $0x40] sm:$0xff] %v504
        %537 = vst [vmem:[%s244 + $0x48] sm:$0xff] %v505
        %538 = vst [vmem:[%s244 + $0x50] sm:$0xff] %v506
        %539 = vst [vmem:[%s244 + $0x58] sm:$0xff] %v507
        %540 = vst [vmem:[%s244 + $0x60] sm:$0xff] %v508
        %541 = vst [vmem:[%s244 + $0x68] sm:$0xff] %v509
        %542 = vst [vmem:[%s244 + $0x70] sm:$0xff] %v510
        %543 = vst [vmem:[%s244 + $0x78] sm:$0xff] %v511
        %544 = vst [vmem:[%s244 + $0x80] sm:$0xff] %v512
        %545 = vst [vmem:[%s244 + $0x88] sm:$0xff] %v513
        %546 = vst [vmem:[%s244 + $0x90] sm:$0xff] %v514
        %547 = vst [vmem:[%s244 + $0x98] sm:$0xff] %v515
        %548 = vst [vmem:[%s244 + $0xa0] sm:$0xff] %v516
        %549 = vst [vmem:[%s244 + $0xa8] sm:$0xff] %v517
        %550 = vst [vmem:[%s244 + $0xb0] sm:$0xff] %v518
        %551 = vst [vmem:[%s244 + $0xb8] sm:$0xff] %v519
        %552 = vst [vmem:[%s244 + $0xc0] sm:$0xff] %v520
        %553 = vst [vmem:[%s244 + $0xc8] sm:$0xff] %v521
        %554 = vst [vmem:[%s244 + $0xd0] sm:$0xff] %v522
        %555 = vst [vmem:[%s244 + $0xd8] sm:$0xff] %v523
        %556 = vst [vmem:[%s244 + $0xe0] sm:$0xff] %v524
        %557 = vst [vmem:[%s244 + $0xe8] sm:$0xff] %v525
        %558 = vst [vmem:[%s244 + $0xf0] sm:$0xff] %v526
        %559 = vst [vmem:[%s244 + $0xf8] sm:$0xff] %v527
        %s560 = sand.u32 %s118, 1
        %s561 = scalar_lea.sflag [#allocation4], %s560
        %s562 = sand.u32 %s118, 1
        %s563 = smul.addr %s562, 256
        %s564 = scalar_lea.vmem [#allocation8], %s563
        // Predicated region
        $region45: #{tpu_custom_call.1} parent=31 // pred_check
          %p565 = pneg %p128
        $region46: #{tpu_custom_call.1} parent=31 // pred_check_branch
          %567 = sbr.rel (%p565) target = $region48
        $region47: #{tpu_custom_call.1} parent=31 // pred_region
          %s568 = smul.u32 16, %s25
          %s570 = ssub.s32 4096, 4096
          %571 = vsyncadd %s561, %s570
          %s572 = smul.addr %s568, 2
          %s573 = smul.addr %s26, 32
          %s574 = sadd.s32 %s572, %s573
          %s575 = smul.addr %s574, 128
          %s576 = scalar_lea.hbm %s3, %s575
          %s577 = sshll.u32 %s564, 4
          %s578 = int_to_ptr.vmem [resolvable:$true] %s577
          %583 = dma.vmem_to_hbm [thread:$0]  %s578, 4096, %s576, %s561, 128, 128, 8
        $region48: #{tpu_custom_call.1} parent=31 // pred_fallthru
          _
      $region32: #{tpu_custom_call.1} parent=5 // pred_fallthru
        _
      %p584 = scmp.le.s32.totalorder 2, %s16
      // Predicated region
      $region49: #{tpu_custom_call.1} parent=5 // pred_check
        %p585 = pneg %p584
      $region50: #{tpu_custom_call.1} parent=5 // pred_check_branch
        %587 = sbr.rel (%p585) target = $region52
      $region51: #{tpu_custom_call.1} parent=5 // pred_region
        %s588 = ssub.s32 %s16, 2
        // Predicated region
        $region53: #{tpu_custom_call.1} parent=51 // pred_check
          %p589 = pneg %p134
        $region54: #{tpu_custom_call.1} parent=51 // pred_check_branch
          %591 = sbr.rel (%p589) target = $region56
        $region55: #{tpu_custom_call.1} parent=51 // pred_region
          %s592 = sand.u32 %s119, 1
          %s593 = scalar_lea.sflag [#allocation4], %s592
          %s594 = sand.u32 %s119, 1
          %s595 = smul.addr %s594, 256
          %s596 = scalar_lea.vmem [#allocation8], %s595
          %597 = dma.done %s593, 4096
        $region56: #{tpu_custom_call.1} parent=51 // pred_fallthru
          _
      $region52: #{tpu_custom_call.1} parent=5 // pred_fallthru
        _
    $region6: #{tpu_custom_call.1} parent=1 // loop_footer
      %s20 = sadd.s32 1, %s16
    $region7: #{tpu_custom_call.1} parent=1 // loop_footer_branch
      %15 = sbr.rel target = $region3
    $region8: #{tpu_custom_call.1} parent=1 // loop_exit
      _
    %598 = vsyncpa [#allocation3], 1
    %s599 = scalar_lea.sflag [#allocation3], 1
    %600 = vsyncpa %s599, 1
    %601 = vsyncpa [#allocation6], 1
    %602 = vsyncpa [#allocation4], 1
    %s603 = scalar_lea.sflag [#allocation4], 1
    %604 = vsyncpa %s603, 1

</llo_original>
